<compile_context>
chip_gen: v7x
topology: tpu7x:2x2x1
jax: 0.10.0
libtpu: 0.0.40
codegen_flags: <defaults>
</compile_context>

<pallas_src>
import functools
import math

import jax
import jax.numpy as jnp
import numpy as np
from jax.experimental import pallas as pl
from jax.experimental.pallas import tpu as pltpu

_LANE = 128
_PARTIAL_ROWS = 8          # sublane-aligned rows per per-core partial-sum block


def _round_up(x, m):
    return ((x + m - 1) // m) * m


def _lcm(a, b):
    return a * b // math.gcd(a, b)


def _vmem_capacity_bytes():
    try:
        return int(pltpu.get_tpu_info().vmem_capacity_bytes)
    except Exception:
        return 64 * 1024 * 1024          # conservative (v7x-sized) fallback


def _bce_kernel(*refs, use_w, return_loss_m, need_mask, rows_total,
                tile_rows, tiles_per_par, total_tiles):
    """Elementwise BCE-with-logits (+ optional ratio weighting) and reduction.

    Grid = (parallel chunk, batch tile).  A lane-dense (1, W) VMEM scratch
    accumulates per-lane partial sums (sublane reduce only); each parallel
    chunk writes its partials to its own output block on its last step and the
    wrapper does the final tiny reduce + scaling.
    """
    it = iter(refs)
    logits_ref = next(it)
    targets_ref = next(it)
    ew_neg_ref = next(it) if use_w else None    # exp(ratio),   target <= 0.5
    ew_pos_ref = next(it) if use_w else None    # exp(1-ratio), target >  0.5
    loss_m_ref = next(it) if return_loss_m else None
    partial_ref = next(it)
    acc_ref = next(it)

    p = pl.program_id(0)
    i = pl.program_id(1)
    g = p * tiles_per_par + i                   # global tile index

    @pl.when(i == 0)
    def _():
        acc_ref[...] = jnp.zeros_like(acc_ref)

    x = logits_ref[...].astype(jnp.float32)
    t = targets_ref[...].astype(jnp.float32)

    # Numerically stable binary_cross_entropy_with_logits (reduction='none'):
    #   loss = max(x, 0) - x*t + log1p(exp(-|x|))
    loss_m = jnp.maximum(x, 0.0) - x * t + jnp.log1p(jnp.exp(-jnp.abs(x)))

    if use_w:
        # ratio2weight: the exp() was hoisted to the wrapper; in-kernel it is a
        # pure select between the two precomputed weight tables.
        # (The original `weights[targets_mask > 1] = 0` can never fire because
        #  targets_mask is a 0/1 threshold, so it is dropped here.)
        loss_m = loss_m * jnp.where(t > 0.5, ew_pos_ref[...], ew_neg_ref[...])

    if return_loss_m:
        loss_m_ref[...] = loss_m.astype(loss_m_ref.dtype)

    if need_mask:
        # Only the *global* last tile can overhang the row count; all other
        # tiles take the cheap unmasked reduce.  Use jnp.where (not multiply)
        # so NaN/Inf from out-of-bounds garbage rows cannot reach the sum.
        @pl.when(g == total_tiles - 1)
        def _():
            rows_left = rows_total - g * tile_rows
            row_id = jax.lax.broadcasted_iota(jnp.int32, loss_m.shape, 0)
            masked = jnp.where(row_id < rows_left, loss_m, 0.0)
            acc_ref[...] += jnp.sum(masked, axis=0, keepdims=True)

        @pl.when(g != total_tiles - 1)
        def _():
            acc_ref[...] += jnp.sum(loss_m, axis=0, keepdims=True)
    else:
        acc_ref[...] += jnp.sum(loss_m, axis=0, keepdims=True)

    # Emit this chunk's lane-wise partial sums once, on its last step.
    @pl.when(i == pl.num_programs(1) - 1)
    def _():
        row_id = jax.lax.broadcasted_iota(jnp.int32, partial_ref.shape, 0)
        partial_ref[...] = jnp.where(row_id == 0, acc_ref[...], 0.0)


def bce_loss(logits, targets, sample_weight=None, size_sum=True,
             return_loss_m=True, tile_rows=None):
    """Pallas equivalent of BCELoss.forward (smoothing=None as in __init__).

    Returns (loss, loss_m) like the PyTorch module; loss_m is None when
    return_loss_m=False (loss-only fast path that skips one full HBM stream).
    `tile_rows` (rows of the internal layout) is normally auto-sized.
    """
    B, C = logits.shape
    use_w = sample_weight is not None
    out_dtype = logits.dtype

    # ---- layout: go lane-dense when C is lane-sparse and the flat size allows
    #      a free reshape to a (B*C/128, 128) slab (zero-copy both ways). ----
    slab = (C % _LANE != 0) and ((B * C) % _LANE == 0)
    if slab:
        width = _LANE
        rows_total = (B * C) // _LANE
        period = _lcm(C, _LANE) // _LANE      # ratio-pattern period (slab rows)
    else:
        width = C
        rows_total = B
        period = 1

    itemsizes = [jnp.dtype(logits.dtype).itemsize,
                 jnp.dtype(targets.dtype).itemsize]
    if return_loss_m:
        itemsizes.append(jnp.dtype(out_dtype).itemsize)

    sublane = 16 if min(itemsizes) < 4 else 8   # bf16 packs 16 rows per vreg
    base = _lcm(sublane, period) if (use_w and slab) else sublane

    vmem_cap = _vmem_capacity_bytes()

    # ---- byte-based tile sizing: ~8 MiB per streamed block on 128 MiB-VMEM
    #      parts (v5e/v6e), ~4 MiB on 64 MiB parts (v7x); clamp the total
    #      double-buffered footprint to ~55% of VMEM. ----
    if tile_rows is None:
        target_block = (8 << 20) if vmem_cap >= (100 << 20) else (4 << 20)
        tile_rows = target_block // max(width * max(itemsizes), 1)
        per_row = width * sum(itemsizes)
        if use_w and slab and period > 1:
            per_row += 2 * width * 4    # pre-tiled f32 weight tables in VMEM too
        tile_rows = min(tile_rows, int(vmem_cap * 0.55) // max(2 * per_row, 1))
    tile_rows = max(base, (tile_rows // base) * base)
    tile_rows = min(tile_rows, _round_up(rows_total, base))
    tile_rows = max(base, tile_rows)

    total_tiles = pl.cdiv(rows_total, tile_rows)
    # Leading "parallel" axis so the 2 TensorCores on v7x split the reduction;
    # a no-op (pure sequential) on 1-TC chips.
    # TODO(synk): allow an uneven 2-way split when total_tiles is odd.
    num_par = 2 if (total_tiles >= 2 and total_tiles % 2 == 0) else 1
    tiles_per_par = total_tiles // num_par
    need_mask = (rows_total % tile_rows) != 0

    data_map = lambda p, i, tpp=tiles_per_par: (p * tpp + i, 0)

    if slab:
        x2 = logits.reshape(rows_total, width)      # zero-copy view
        t2 = targets.reshape(rows_total, width)
    else:
        x2, t2 = logits, targets

    args = [x2, t2]                                 # native dtypes stream
    in_specs = [pl.BlockSpec((tile_rows, width), data_map),
                pl.BlockSpec((tile_rows, width), data_map)]

    if use_w:
        ratio = np.asarray(sample_weight, dtype=np.float32).reshape(-1)
        assert ratio.shape[0] == C
        w_neg = np.exp(ratio)                       # weight when target <= 0.5
        w_pos = np.exp(1.0 - ratio)                 # weight when target >  0.5
        if slab:
            # Column-of-flat-index pattern, tiled out to lane width 128.
            pat_rows = tile_rows if period > 1 else 1
            col = np.arange(pat_rows * width) % C
            ew_neg = w_neg[col].reshape(pat_rows, width)
            ew_pos = w_pos[col].reshape(pat_rows, width)
        else:
            pat_rows = 1
            ew_neg = w_neg.reshape(1, C)
            ew_pos = w_pos.reshape(1, C)
        args += [jnp.asarray(ew_neg), jnp.asarray(ew_pos)]
        pat_spec = pl.BlockSpec((pat_rows, width), lambda p, i: (0, 0))
        in_specs += [pat_spec, pat_spec]

    out_shape = []
    out_specs = []
    if return_loss_m:
        out_shape.append(jax.ShapeDtypeStruct((rows_total, width), out_dtype))
        out_specs.append(pl.BlockSpec((tile_rows, width), data_map))
    out_shape.append(jax.ShapeDtypeStruct((num_par * _PARTIAL_ROWS, width),
                                          jnp.float32))
    out_specs.append(pl.BlockSpec((_PARTIAL_ROWS, width), lambda p, i: (p, 0)))

    kernel = functools.partial(
        _bce_kernel,
        use_w=use_w, return_loss_m=return_loss_m, need_mask=need_mask,
        rows_total=rows_total, tile_rows=tile_rows,
        tiles_per_par=tiles_per_par, total_tiles=total_tiles)

    results = pl.pallas_call(
        kernel,
        out_shape=tuple(out_shape),
        grid=(num_par, tiles_per_par),
        in_specs=in_specs,
        out_specs=tuple(out_specs),
        scratch_shapes=[pltpu.VMEM((1, width), jnp.float32)],
        compiler_params=pltpu.CompilerParams(
            dimension_semantics=("parallel", "arbitrary"),
            # ~0.72*capacity: above the ~55% tile budget, safe on 64 MiB v7x.
            vmem_limit_bytes=int(vmem_cap * 0.72)),
    )(*args)

    if return_loss_m:
        loss_m2d, partial = results
        loss_m = loss_m2d.reshape(B, C) if slab else loss_m2d
    else:
        partial = results[0] if isinstance(results, (tuple, list)) else results
        loss_m = None

    scale = (1.0 / B) if size_sum else 1.0
    loss = jnp.sum(partial) * jnp.float32(scale)
    return loss, loss_m


def _ref_bce_loss(logits, targets, sample_weight=None, size_sum=True):
    """Pure-JAX reference mirroring the PyTorch module."""
    x = logits.astype(jnp.float32)
    t = targets.astype(jnp.float32)
    lm = jnp.maximum(x, 0.0) - x * t + jnp.log1p(jnp.exp(-jnp.abs(x)))
    if sample_weight is not None:
        ratio = jnp.asarray(sample_weight, dtype=jnp.float32)
        tm = jnp.where(t > 0.5, 1.0, 0.0)
        w = jnp.exp((1.0 - tm) * ratio + tm * (1.0 - ratio))
        w = jnp.where(tm > 1.0, 0.0, w)
        lm = lm * w
    loss = lm.sum(1).mean() if size_sum else lm.sum()
    return loss, lm


if __name__ == "__main__":
    key = jax.random.PRNGKey(0)
    k1, k2 = jax.random.split(key)

    def check(got, want, rtol=1e-5, atol=1e-5):
        got = np.asarray(jnp.asarray(got, dtype=jnp.float32))
        want = np.asarray(jnp.asarray(want, dtype=jnp.float32))
        assert np.allclose(got, want, rtol=rtol, atol=atol), (got, want)

    B, C = 16, 32                       # batch, num attributes
    logits = jax.random.normal(k1, (B, C), dtype=jnp.float32)
    targets = (jax.random.uniform(k2, (B, C)) > 0.5).astype(jnp.float32)
    ratio = np.linspace(0.1, 0.9, C).astype(np.float32)

    # 1) default module config (lane-dense slab path, unweighted)
    loss, loss_m = bce_loss(logits, targets)
    jax.block_until_ready((loss, loss_m))
    ref_loss, ref_lm = _ref_bce_loss(logits, targets, None, True)
    check(loss, ref_loss); check(loss_m, ref_lm)

    # 2) attribute-ratio weighting (exercises ratio2weight, hoisted exp tables)
    loss_w, loss_m_w = bce_loss(logits, targets, sample_weight=ratio)
    jax.block_until_ready((loss_w, loss_m_w))
    ref_loss_w, ref_lm_w = _ref_bce_loss(logits, targets, ratio, True)
    check(loss_w, ref_loss_w); check(loss_m_w, ref_lm_w)

    # 3) loss-only fast path, size_sum=False (skips the loss_m HBM stream)
    loss_s, lm_none = bce_loss(logits, targets, size_sum=False,
                               return_loss_m=False)
    jax.block_until_ready(loss_s)
    ref_loss_s, _ = _ref_bce_loss(logits, targets, None, False)
    assert lm_none is None
    check(loss_s, ref_loss_s)

    # 4) B*C not a multiple of 128 -> (B, C) fallback layout + row masking
    B2 = 19
    logits2 = jax.random.normal(k1, (B2, C), dtype=jnp.float32)
    targets2 = (jax.random.uniform(k2, (B2, C)) > 0.5).astype(jnp.float32)
    loss2, lm2 = bce_loss(logits2, targets2, sample_weight=ratio)
    jax.block_until_ready((loss2, lm2))
    ref_loss2, ref_lm2 = _ref_bce_loss(logits2, targets2, ratio, True)
    check(loss2, ref_loss2); check(lm2, ref_lm2)

    # 5) native bf16 streaming (bf16 stays bf16 in HBM; f32 math in-kernel)
    logits_b = logits.astype(jnp.bfloat16)
    targets_b = targets.astype(jnp.bfloat16)
    loss_b, lm_b = bce_loss(logits_b, targets_b)
    jax.block_until_ready((loss_b, lm_b))
    ref_loss_b, ref_lm_b = _ref_bce_loss(logits_b, targets_b, None, True)
    check(loss_b, ref_loss_b, rtol=1e-4, atol=1e-4)
    check(lm_b, ref_lm_b, rtol=2e-2, atol=2e-2)

    # 6) forced small tile -> multiple tiles + 2-way parallel split
    B3 = 64
    logits3 = jax.random.normal(k1, (B3, C), dtype=jnp.float32)
    targets3 = (jax.random.uniform(k2, (B3, C)) > 0.5).astype(jnp.float32)
    loss3, lm3 = bce_loss(logits3, targets3, sample_weight=ratio, tile_rows=8)
    jax.block_until_ready((loss3, lm3))
    ref_loss3, ref_lm3 = _ref_bce_loss(logits3, targets3, ratio, True)
    check(loss3, ref_loss3); check(lm3, ref_lm3)

    # 7) weighted slab with ratio-pattern period > 1 (C does not divide 128)
    B4, C4 = 32, 24
    logits4 = jax.random.normal(k1, (B4, C4), dtype=jnp.float32)
    targets4 = (jax.random.uniform(k2, (B4, C4)) > 0.5).astype(jnp.float32)
    ratio4 = np.linspace(0.2, 0.8, C4).astype(np.float32)
    loss4, lm4 = bce_loss(logits4, targets4, sample_weight=ratio4)
    jax.block_until_ready((loss4, lm4))
    ref_loss4, ref_lm4 = _ref_bce_loss(logits4, targets4, ratio4, True)
    check(loss4, ref_loss4); check(lm4, ref_lm4)

    print("KERNEL_OK")
</pallas_src>

<mosaic_0001>
module attributes {stable_mosaic.version = 11 : i64} {
  func.func @_bce_kernel(%arg0: i32, %arg1: i32, %arg2: memref<8x128xf32, #tpu.memory_space<vmem>>, %arg3: memref<8x128xf32, #tpu.memory_space<vmem>>, %arg4: memref<8x128xf32, #tpu.memory_space<vmem>>, %arg5: memref<8x128xf32, #tpu.memory_space<vmem>>, %arg6: memref<1x128xf32, #tpu.memory_space<vmem>>) attributes {dimension_semantics = [#tpu.dimension_semantics<parallel>, #tpu.dimension_semantics<arbitrary>], iteration_bounds = array<i64: 1, 1>, scalar_prefetch = 0 : i64, scratch_operands = 1 : i64, tpu.core_type = #tpu.core_type<tc>, window_params = [{transform_indices = @transform_0, window_bounds = array<i64: 8, 128>}, {transform_indices = @transform_1, window_bounds = array<i64: 8, 128>}, {transform_indices = @transform_2, window_bounds = array<i64: 8, 128>}, {transform_indices = @transform_3, window_bounds = array<i64: 8, 128>}]} {
    %c1_i32 = arith.constant 1 : i32
    %0 = arith.muli %arg0, %c1_i32 : i32
    %1 = arith.addi %0, %arg1 : i32
    %c0_i32 = arith.constant 0 : i32
    %2 = arith.cmpi eq, %arg1, %c0_i32 : i32
    %3 = arith.extui %2 : i1 to i32
    %c0_i32_0 = arith.constant 0 : i32
    %4 = arith.cmpi ne, %3, %c0_i32_0 : i32
    scf.if %4 {
      %cst_13 = arith.constant 0.000000e+00 : f32
      %27 = vector.broadcast %cst_13 : f32 to vector<1x128xf32>
      %c0_14 = arith.constant 0 : index
      %c0_15 = arith.constant 0 : index
      %28 = vector.load %arg6[%c0_14, %c0_15] : memref<1x128xf32, #tpu.memory_space<vmem>>, vector<1x128xf32>
      tpu.vector_store %arg6[%c0_14, %c0_15], %27 {strides = array<i32>} : memref<1x128xf32, #tpu.memory_space<vmem>>, vector<1x128xf32>,
    } else {
    }
    %c0 = arith.constant 0 : index
    %c0_1 = arith.constant 0 : index
    %5 = vector.load %arg2[%c0, %c0_1] : memref<8x128xf32, #tpu.memory_space<vmem>>, vector<8x128xf32>
    %c0_2 = arith.constant 0 : index
    %c0_3 = arith.constant 0 : index
    %6 = vector.load %arg3[%c0_2, %c0_3] : memref<8x128xf32, #tpu.memory_space<vmem>>, vector<8x128xf32>
    %cst = arith.constant 0.000000e+00 : f32
    %7 = vector.broadcast %cst : f32 to vector<8x128xf32>
    %8 = arith.maximumf %5, %7 : vector<8x128xf32>
    %9 = arith.mulf %5, %6 : vector<8x128xf32>
    %10 = arith.subf %8, %9 : vector<8x128xf32>
    %11 = math.absf %5 : vector<8x128xf32>
    %cst_4 = arith.constant 0.000000e+00 : f32
    %12 = vector.broadcast %cst_4 : f32 to vector<8x128xf32>
    %13 = arith.subf %12, %11 : vector<8x128xf32>
    %14 = math.exp %13 : vector<8x128xf32>
    %15 = math.log1p %14 : vector<8x128xf32>
    %16 = arith.addf %10, %15 : vector<8x128xf32>
    %c0_5 = arith.constant 0 : index
    %c0_6 = arith.constant 0 : index
    %17 = vector.load %arg4[%c0_5, %c0_6] : memref<8x128xf32, #tpu.memory_space<vmem>>, vector<8x128xf32>
    tpu.vector_store %arg4[%c0_5, %c0_6], %16 {strides = array<i32>} : memref<8x128xf32, #tpu.memory_space<vmem>>, vector<8x128xf32>,
    %c0_i32_7 = arith.constant 0 : i32
    %18 = arith.cmpi eq, %1, %c0_i32_7 : i32
    %19 = arith.extui %18 : i1 to i32
    %c0_i32_8 = arith.constant 0 : i32
    %20 = arith.cmpi ne, %19, %c0_i32_8 : i32
    scf.if %20 {
      %c8_i32 = arith.constant 8 : i32
      %27 = arith.muli %1, %c8_i32 : i32
      %c4_i32 = arith.constant 4 : i32
      %28 = arith.subi %c4_i32, %27 : i32
      %29 = tpu.iota {dimensions = array<i32: 0>} : vector<8x128xi32>
      %30 = vector.broadcast %28 : i32 to vector<8x128xi32>
      %31 = arith.cmpi slt, %29, %30 : vector<8x128xi32>
      %cst_13 = arith.constant 0.000000e+00 : f32
      %32 = vector.broadcast %cst_13 : f32 to vector<8x128xf32>
      %33 = arith.select %31, %16, %32 : vector<8x128xi1>, vector<8x128xf32>
      %c0_14 = arith.constant 0 : index
      %c0_15 = arith.constant 0 : index
      %34 = vector.load %arg6[%c0_14, %c0_15] : memref<1x128xf32, #tpu.memory_space<vmem>>, vector<1x128xf32>
      %cst_16 = arith.constant dense<0.000000e+00> : vector<128xf32>
      %35 = vector.multi_reduction <add>, %33, %cst_16 [0] : vector<8x128xf32> to vector<128xf32>
      %36 = vector.shape_cast %35 : vector<128xf32> to vector<1x128xf32>
      %37 = arith.addf %34, %36 : vector<1x128xf32>
      %c0_17 = arith.constant 0 : index
      %c0_18 = arith.constant 0 : index
      %38 = vector.load %arg6[%c0_17, %c0_18] : memref<1x128xf32, #tpu.memory_space<vmem>>, vector<1x128xf32>
      tpu.vector_store %arg6[%c0_17, %c0_18], %37 {strides = array<i32>} : memref<1x128xf32, #tpu.memory_space<vmem>>, vector<1x128xf32>,
    } else {
    }
    %c0_i32_9 = arith.constant 0 : i32
    %21 = arith.cmpi ne, %1, %c0_i32_9 : i32
    %22 = arith.extui %21 : i1 to i32
    %c0_i32_10 = arith.constant 0 : i32
    %23 = arith.cmpi ne, %22, %c0_i32_10 : i32
    scf.if %23 {
      %c0_13 = arith.constant 0 : index
      %c0_14 = arith.constant 0 : index
      %27 = vector.load %arg6[%c0_13, %c0_14] : memref<1x128xf32, #tpu.memory_space<vmem>>, vector<1x128xf32>
      %cst_15 = arith.constant dense<0.000000e+00> : vector<128xf32>
      %28 = vector.multi_reduction <add>, %16, %cst_15 [0] : vector<8x128xf32> to vector<128xf32>
      %29 = vector.shape_cast %28 : vector<128xf32> to vector<1x128xf32>
      %30 = arith.addf %27, %29 : vector<1x128xf32>
      %c0_16 = arith.constant 0 : index
      %c0_17 = arith.constant 0 : index
      %31 = vector.load %arg6[%c0_16, %c0_17] : memref<1x128xf32, #tpu.memory_space<vmem>>, vector<1x128xf32>
      tpu.vector_store %arg6[%c0_16, %c0_17], %30 {strides = array<i32>} : memref<1x128xf32, #tpu.memory_space<vmem>>, vector<1x128xf32>,
    } else {
    }
    %c0_i32_11 = arith.constant 0 : i32
    %24 = arith.cmpi eq, %arg1, %c0_i32_11 : i32
    %25 = arith.extui %24 : i1 to i32
    %c0_i32_12 = arith.constant 0 : i32
    %26 = arith.cmpi ne, %25, %c0_i32_12 : i32
    scf.if %26 {
      %27 = tpu.iota {dimensions = array<i32: 0>} : vector<8x128xi32>
      %c0_i32_13 = arith.constant 0 : i32
      %28 = vector.broadcast %c0_i32_13 : i32 to vector<8x128xi32>
      %29 = arith.cmpi eq, %27, %28 : vector<8x128xi32>
      %c0_14 = arith.constant 0 : index
      %c0_15 = arith.constant 0 : index
      %30 = vector.load %arg6[%c0_14, %c0_15] : memref<1x128xf32, #tpu.memory_space<vmem>>, vector<1x128xf32>
      %cst_16 = arith.constant 0.000000e+00 : f32
      %31 = vector.shape_cast %30 : vector<1x128xf32> to vector<1x128xf32>
      %32 = vector.broadcast %31 : vector<1x128xf32> to vector<8x128xf32>
      %33 = vector.broadcast %cst_16 : f32 to vector<8x128xf32>
      %34 = arith.select %29, %32, %33 : vector<8x128xi1>, vector<8x128xf32>
      %c0_17 = arith.constant 0 : index
      %c0_18 = arith.constant 0 : index
      %35 = vector.load %arg5[%c0_17, %c0_18] : memref<8x128xf32, #tpu.memory_space<vmem>>, vector<8x128xf32>
      tpu.vector_store %arg5[%c0_17, %c0_18], %34 {strides = array<i32>} : memref<8x128xf32, #tpu.memory_space<vmem>>, vector<8x128xf32>,
    } else {
    }
    return
  }
  func.func @transform_0(%arg0: i32, %arg1: i32) -> (i32, i32) {
    %c1_i32 = arith.constant 1 : i32
    %0 = arith.muli %arg0, %c1_i32 : i32
    %1 = arith.addi %0, %arg1 : i32
    %c0_i32 = arith.constant 0 : i32
    %c0_i32_0 = arith.constant 0 : i32
    return %1, %c0_i32 : i32, i32
  }
  func.func @transform_1(%arg0: i32, %arg1: i32) -> (i32, i32) {
    %c1_i32 = arith.constant 1 : i32
    %0 = arith.muli %arg0, %c1_i32 : i32
    %1 = arith.addi %0, %arg1 : i32
    %c0_i32 = arith.constant 0 : i32
    %c0_i32_0 = arith.constant 0 : i32
    return %1, %c0_i32 : i32, i32
  }
  func.func @transform_2(%arg0: i32, %arg1: i32) -> (i32, i32) {
    %c1_i32 = arith.constant 1 : i32
    %0 = arith.muli %arg0, %c1_i32 : i32
    %1 = arith.addi %0, %arg1 : i32
    %c0_i32 = arith.constant 0 : i32
    %c0_i32_0 = arith.constant 0 : i32
    return %1, %c0_i32 : i32, i32
  }
  func.func @transform_3(%arg0: i32, %arg1: i32) -> (i32, i32) {
    %c0_i32 = arith.constant 0 : i32
    %c0_i32_0 = arith.constant 0 : i32
    return %arg0, %c0_i32 : i32, i32
  }
}

</mosaic_0001>

<llo_original>
// kernel: tpu_custom_call.1
$region0: #{tpu_custom_call.1}
  #allocation0 [shape = 'u32[]', space=smem, size = 0x4, offset = 0x4, fixed_abs, tag = 'smem constant byte address 0x4 - core index']
  #allocation1 [shape = 'u32[144,128]{1,0:T(1,128)}', space=vmem, size = 0x12000, scoped, tag = 'internal scratch']
  #allocation2 [shape = 'f32[1,128]{1,0:T(1,128)}', space=vmem, size = 0x200, scoped, tag = 'scratch operand']
  %s0 = inlined_call_operand.hbm [shape: f32[4,128], index: 0, kind: input, shape index: {}]
  %s1 = inlined_call_operand.hbm [shape: f32[4,128], index: 1, kind: input, shape index: {}]
  %s2 = inlined_call_operand.hbm [shape: f32[4,128], index: 2, kind: output, shape index: {0}]
  %s3 = inlined_call_operand.hbm [shape: f32[8,128], index: 3, kind: output, shape index: {1}]
  %4 = xla_tuple %s2, %s3
  %s5 = sld [smem:[#allocation0]]
  $region50: #{tpu_custom_call.1} parent=0
    _
  %s7 = ssub.s32 1, %s5
  %s8 = scalar_select 0, %s7, %s5
  $region1: #{tpu_custom_call.1} parent=0
    #allocation3 [shape = 'u8[4096]{0}', space=vmem, size = 0x1000, scoped, tag = 'input window, operand 0, single buffered']
    #allocation4 [shape = 's32[1]{0}', space=sflag, size = 0x4, scoped, tag = 'scoped memory for tpu_custom_call.1']
    #allocation5 [shape = 's32[1]{0}', space=sflag, size = 0x4, scoped, tag = 'scoped memory for tpu_custom_call.1']
    #allocation6 [shape = 'u8[4096]{0}', space=vmem, size = 0x1000, scoped, tag = 'input window, operand 1, single buffered']
    #allocation7 [shape = 's32[1]{0}', space=sflag, size = 0x4, scoped, tag = 'scoped memory for tpu_custom_call.1']
    #allocation8 [shape = 'u8[4096]{0}', space=vmem, size = 0x1000, scoped, tag = 'output window, operand 0, single buffered']
    #allocation9 [shape = 'u8[4096]{0}', space=vmem, size = 0x1000, scoped, tag = 'output window, operand 1, single buffered']
    #allocation10 [shape = 's32[1]{0}', space=sflag, size = 0x4, scoped, tag = 'scoped memory for tpu_custom_call.1']
    %9 = vsyncpa [#allocation4], 0
    %10 = vsyncpa [#allocation7], 0
    %11 = vsyncpa [#allocation5], 0
    %12 = vsyncpa [#allocation10], 0
    // Predicated region
    $region2: #{tpu_custom_call.1} parent=1 // pred_check
      _
    $region3: #{tpu_custom_call.1} parent=1 // pred_check_branch
      %14 = sbr.rel (0) target = $region5
    $region4: #{tpu_custom_call.1} parent=1 // pred_region
      %s15 = sadd.s32 0, 0
      %s16 = smul.u32 2, %s15
      %s17 = ssub.s32 1, %s16
      %s18 = smul.u32 64, %s17
      %s20 = ssub.s32 128, %s18
      %21 = vsyncadd [#allocation4], %s20
      %p22 = scmp.ne.s32.totalorder 0, %s18
      %s23 = smul.addr %s16, 64
      %s24 = scalar_lea.hbm %s0, %s23
      %s25 = smul.u32 4, %s17
      %s26 = sshll.u32 [#allocation3], 4
      %s27 = int_to_ptr.vmem [resolvable:$true] %s26
      %s28 = sshll.u32 %s25, 4
      %32 = dma.hbm_to_vmem [thread:$0]  (%p22), %s24, %s28, %s27, [#allocation4], 64, 64, 4
    $region5: #{tpu_custom_call.1} parent=1 // pred_fallthru
      _
    // Predicated region
    $region6: #{tpu_custom_call.1} parent=1 // pred_check
      _
    $region7: #{tpu_custom_call.1} parent=1 // pred_check_branch
      %34 = sbr.rel (0) target = $region9
    $region8: #{tpu_custom_call.1} parent=1 // pred_region
      %s35 = sadd.s32 0, 0
      %s36 = smul.u32 2, %s35
      %s37 = ssub.s32 1, %s36
      %s38 = smul.u32 64, %s37
      %s40 = ssub.s32 128, %s38
      %41 = vsyncadd [#allocation7], %s40
      %p42 = scmp.ne.s32.totalorder 0, %s38
      %s43 = smul.addr %s36, 64
      %s44 = scalar_lea.hbm %s1, %s43
      %s45 = smul.u32 4, %s37
      %s46 = sshll.u32 [#allocation6], 4
      %s47 = int_to_ptr.vmem [resolvable:$true] %s46
      %s48 = sshll.u32 %s45, 4
      %52 = dma.hbm_to_vmem [thread:$0]  (%p42), %s44, %s48, %s47, [#allocation7], 64, 64, 4
    $region9: #{tpu_custom_call.1} parent=1 // pred_fallthru
      _
    // Predicated region
    $region10: #{tpu_custom_call.1} parent=1 // pred_check
      _
    $region11: #{tpu_custom_call.1} parent=1 // pred_check_branch
      %54 = sbr.rel (0) target = $region13
    $region12: #{tpu_custom_call.1} parent=1 // pred_region
      %55 = dma.done [#allocation4], 128
    $region13: #{tpu_custom_call.1} parent=1 // pred_fallthru
      _
    // Predicated region
    $region14: #{tpu_custom_call.1} parent=1 // pred_check
      _
    $region15: #{tpu_custom_call.1} parent=1 // pred_check_branch
      %57 = sbr.rel (0) target = $region17
    $region16: #{tpu_custom_call.1} parent=1 // pred_region
      %58 = dma.done [#allocation7], 128
    $region17: #{tpu_custom_call.1} parent=1 // pred_fallthru
      _
    %s59 = sadd.s32 0, 0
    %s60 = smul.u32 2, %s59
    %s61 = ssub.s32 1, %s60
    %s62 = smul.u32 64, %s61
    %s63 = sadd.s32 0, 0
    %s64 = smul.u32 2, %s63
    %s65 = ssub.s32 1, %s64
    %s66 = smul.u32 64, %s65
    %s67 = sadd.s32 0, 0
    %s68 = smul.u32 2, %s67
    %s69 = ssub.s32 1, %s68
    %s70 = smul.u32 64, %s69
    %s71 = sadd.s32 0, 0
    %p72 = scmp.eq.s32.totalorder 0, 0
    // Predicated region
    $region18: #{tpu_custom_call.1} parent=1 // pred_check
      %p73 = pneg %p72
    $region19: #{tpu_custom_call.1} parent=1 // pred_check_branch
      %75 = sbr.rel (%p73) target = $region21
    $region20: #{tpu_custom_call.1} parent=1 // pred_region
      %76 = vst [vmem:[#allocation2] sm:$0x1] 0.0
    $region21: #{tpu_custom_call.1} parent=1 // pred_fallthru
      _
    %v77 = vld [vmem:[#allocation3] sm:$0xff]
    %v78 = vld [vmem:[#allocation6] sm:$0xff]
    %v79 = vmax.f32 %v77, 0.0
    %v80 = vmul.f32 %v77, %v78
    %v81 = vsub.f32 %v79, %v80
    %v82 = vand.u32 2147483647, %v77
    %v83 = vsub.f32 0.0, %v82
    %v84 = vmul.f32 %v83, 1.442695
    %v85 = vpow.pop %v84
    %v86 = vadd.f32 %v85, 1.0
    %v87 = vlog2.pop %v86
    %v88 = vmul.f32 %v87, 0.6931472
    %v89 = vmul.f32 -0.5, %v85
    %v90 = vadd.f32 %v89, 1.0
    %v91 = vmul.f32 %v90, %v85
    %v92 = vand.u32 2147483647, %v85
    %vm93 = vcmp.lt.f32.partialorder %v92, 0.0004427343
    %v94 = vsel %vm93, %v91, %v88
    %v95 = vadd.f32 %v81, %v94
    %96 = vst [vmem:[#allocation8] sm:$0xff] %v95
    %p97 = scmp.eq.s32.totalorder %s71, 0
    // Predicated region
    $region22: #{tpu_custom_call.1} parent=1 // pred_check
      %p98 = pneg %p97
    $region23: #{tpu_custom_call.1} parent=1 // pred_check_branch
      %100 = sbr.rel (%p98) target = $region25
    $region24: #{tpu_custom_call.1} parent=1 // pred_region
      %s101 = smul.u32 %s71, 8
      %s102 = ssub.s32 4, %s101
      %v103 = vlaneseq
      %v104 = vshrl.u32 %v103, 7
      %v105 = vstv %s102
      %vm106 = vcmp.lt.s32.totalorder %v104, %v105
      %v107 = vsel %vm106, %v95, 0.0
      %v108 = vld [vmem:[#allocation2] sm:$0x1]
      %v109 = vrot.slane %v107, 4
      %v110 = vadd.f32 %v107, %v109
      %v111 = vrot.slane %v110, 2
      %v112 = vadd.f32 %v110, %v111
      %v113 = vrot.slane %v112, 1
      %v114 = vadd.f32 %v112, %v113
      %v115 = vadd.f32 %v108, %v114
      %116 = vst [vmem:[#allocation2] sm:$0x1] %v115
    $region25: #{tpu_custom_call.1} parent=1 // pred_fallthru
      _
    %p117 = scmp.ne.s32.totalorder %s71, 0
    // Predicated region
    $region26: #{tpu_custom_call.1} parent=1 // pred_check
      %p118 = pneg %p117
    $region27: #{tpu_custom_call.1} parent=1 // pred_check_branch
      %120 = sbr.rel (%p118) target = $region29
    $region28: #{tpu_custom_call.1} parent=1 // pred_region
      %v121 = vld [vmem:[#allocation2] sm:$0x1]
      %v122 = vrot.slane %v95, 4
      %v123 = vadd.f32 %v95, %v122
      %v124 = vrot.slane %v123, 2
      %v125 = vadd.f32 %v123, %v124
      %v126 = vrot.slane %v125, 1
      %v127 = vadd.f32 %v125, %v126
      %v128 = vadd.f32 %v121, %v127
      %129 = vst [vmem:[#allocation2] sm:$0x1] %v128
    $region29: #{tpu_custom_call.1} parent=1 // pred_fallthru
      _
    // Predicated region
    $region30: #{tpu_custom_call.1} parent=1 // pred_check
      %p130 = pneg %p72
    $region31: #{tpu_custom_call.1} parent=1 // pred_check_branch
      %132 = sbr.rel (%p130) target = $region33
    $region32: #{tpu_custom_call.1} parent=1 // pred_region
      %v133 = vlaneseq
      %v134 = vshrl.u32 %v133, 7
      %vm135 = vcmp.eq.s32.totalorder %v134, 0
      %v136 = vld [vmem:[#allocation2] sm:$0x1]
      %v138 = vlaneseq
      %v139 = vshrl.u32 %v138, 7
      %v140 = vsub.s32 0, %v139
      %v141 = vrot.slane %v136, %v140
      %v143 = vsel %vm135, %v141, 0.0
      %144 = vst [vmem:[#allocation9] sm:$0xff] %v143
    $region33: #{tpu_custom_call.1} parent=1 // pred_fallthru
      _
    // Predicated region
    $region34: #{tpu_custom_call.1} parent=1 // pred_check
      _
    $region35: #{tpu_custom_call.1} parent=1 // pred_check_branch
      %146 = sbr.rel (0) target = $region37
    $region36: #{tpu_custom_call.1} parent=1 // pred_region
      %s147 = sadd.s32 0, 0
      %s148 = smul.u32 2, %s147
      %s149 = ssub.s32 1, %s148
      %s150 = smul.u32 64, %s149
      %s152 = ssub.s32 128, %s150
      %153 = vsyncadd [#allocation5], %s152
      %p154 = scmp.ne.s32.totalorder 0, %s150
      %s155 = smul.addr %s148, 64
      %s156 = scalar_lea.hbm %s2, %s155
      %s157 = smul.u32 4, %s149
      %s158 = sshll.u32 [#allocation8], 4
      %s159 = int_to_ptr.vmem [resolvable:$true] %s158
      %s160 = sshll.u32 %s157, 4
      %164 = dma.vmem_to_hbm [thread:$0]  (%p154), %s159, %s160, %s156, [#allocation5], 64, 64, 4
    $region37: #{tpu_custom_call.1} parent=1 // pred_fallthru
      _
    // Predicated region
    $region38: #{tpu_custom_call.1} parent=1 // pred_check
      _
    $region39: #{tpu_custom_call.1} parent=1 // pred_check_branch
      %166 = sbr.rel (0) target = $region41
    $region40: #{tpu_custom_call.1} parent=1 // pred_region
      %s168 = ssub.s32 128, 128
      %169 = vsyncadd [#allocation10], %s168
      %s171 = sshll.u32 [#allocation9], 4
      %s172 = int_to_ptr.vmem [resolvable:$true] %s171
      %174 = dma.vmem_to_hbm [thread:$0]  %s172, 128, %s3, [#allocation10]
    $region41: #{tpu_custom_call.1} parent=1 // pred_fallthru
      _
    // Predicated region
    $region42: #{tpu_custom_call.1} parent=1 // pred_check
      _
    $region43: #{tpu_custom_call.1} parent=1 // pred_check_branch
      %176 = sbr.rel (0) target = $region45
    $region44: #{tpu_custom_call.1} parent=1 // pred_region
      %177 = dma.done [#allocation5], 128
    $region45: #{tpu_custom_call.1} parent=1 // pred_fallthru
      _
    // Predicated region
    $region46: #{tpu_custom_call.1} parent=1 // pred_check
      _
    $region47: #{tpu_custom_call.1} parent=1 // pred_check_branch
      %179 = sbr.rel (0) target = $region49
    $region48: #{tpu_custom_call.1} parent=1 // pred_region
      %180 = dma.done [#allocation10], 128
    $region49: #{tpu_custom_call.1} parent=1 // pred_fallthru
      _
    %181 = vsyncpa [#allocation4], 1
    %182 = vsyncpa [#allocation7], 1
    %183 = vsyncpa [#allocation5], 1
    %184 = vsyncpa [#allocation10], 1

</llo_original>
